<compile_context>
chip_gen: v6e
topology: v6e:2x2x1
jax: 0.10.0
libtpu: 0.0.40
codegen_flags: <defaults>
</compile_context>

<pallas_src>
import math

import numpy as np
import jax
import jax.numpy as jnp
from jax import lax
from jax.experimental import pallas as pl
from jax.experimental.pallas import tpu as pltpu

_LANE = 128
_SUBLANE = 8
_MAX_BLOCK_ROWS = 2048  # (2048,128) f32 = 1 MiB per buffer; 3 inputs x 2 bufs = 6 MiB


def _round_up(a, b):
    return ((a + b - 1) // b) * b


def _concrete_scalar(v):
    """Return float(v) if v is a compile-time-known scalar, else None."""
    if isinstance(v, (bool, int, float)):
        return float(v)
    size = getattr(v, "size", None)
    if size is None:
        size = np.size(v)
    if int(size) != 1:
        return None
    try:
        return float(np.asarray(v).reshape(()))
    except Exception:
        # Traced scalar: fall back to streaming it.
        # TODO(synk): a (1,1) SMEM operand would avoid materializing the broadcast.
        return None


def _make_wing_kernel(w, e, c, rows, block_rows, bpp, n_blocks, mask_needed,
                      has_weight_stream, wscale):
    inv_e = 1.0 / e
    groups = block_rows // _SUBLANE

    def kernel(*refs):
        if has_weight_stream:
            x_ref, t_ref, wt_ref, out_ref = refs
        else:
            x_ref, t_ref, out_ref = refs

        p = pl.program_id(0)  # partial index (parallel axis; one per TC on v7x)
        j = pl.program_id(1)  # block index within this partial (arbitrary axis)

        @pl.when(j == 0)
        def _init():
            out_ref[...] = jnp.zeros_like(out_ref)

        x = x_ref[...].astype(jnp.float32)
        t = t_ref[...].astype(jnp.float32)
        diff = x - t
        if has_weight_stream:
            diff = wt_ref[...].astype(jnp.float32) * diff
        elif wscale != 1.0:
            diff = diff * jnp.float32(wscale)

        abs_diff = jnp.abs(diff)
        # log() goes to the EUP slot; the zero-padded/masked rows contribute 0.
        small = w * jnp.log(1.0 + abs_diff * inv_e)
        large = abs_diff - c
        y = jnp.where(abs_diff < w, small, large)

        if mask_needed:
            # Logical (unclamped) block index: rows past `rows` (ragged last
            # block or clamped duplicate blocks) are zeroed.
            blk = p * bpp + j
            row0 = blk * block_rows
            rid = row0 + lax.broadcasted_iota(jnp.int32, (block_rows, _LANE), 0)
            y = jnp.where(rid < rows, y, 0.0)

        # Pure-VPU partial reduction into the resident (8,128) output block.
        out_ref[0] += jnp.sum(y.reshape(groups, _SUBLANE, _LANE), axis=0)

    return kernel


def wing_loss(x, t, weight=1.0, sigma=1, w=10.0, e=2.0):
    """Pallas TPU implementation of WingLoss.forward (sigma is unused, as in the reference)."""
    del sigma
    w = float(w)
    e = float(e)
    c = w - w * math.log(1.0 + w / e)

    x = jnp.asarray(x)
    t = jnp.asarray(t)

    n = int(x.size)
    if n == 0:
        return jnp.float32(0.0)

    wscale = _concrete_scalar(weight)
    has_weight_stream = wscale is None
    if has_weight_stream:
        weight = jnp.asarray(weight)
        if weight.shape != x.shape:
            # TODO(synk): low-rank (per-channel/row) weights could be streamed
            # small and broadcast in-kernel instead of materializing.
            weight = jnp.broadcast_to(weight, x.shape)

    # Lane-dense layout with no full-array copy in the common case:
    #  * large inputs only need n % 128 == 0 (free bitcast reshape); ragged
    #    last blocks are masked in-kernel.
    #  * small single-block inputs additionally need rows % 8 == 0 so the full
    #    array is one legal block; the pad there is at most 1023 elements.
    align = _LANE if n > _MAX_BLOCK_ROWS * _LANE else _SUBLANE * _LANE
    n_pad = _round_up(n, align)
    pad = n_pad - n
    rows = n_pad // _LANE

    def _flat(a):
        a = a.reshape(-1)
        if pad:
            a = jnp.pad(a, (0, pad))  # zeros fall in the small branch -> contribute 0
        return a.reshape(rows, _LANE)

    block_rows = rows if rows <= _MAX_BLOCK_ROWS else _MAX_BLOCK_ROWS
    n_blocks = pl.cdiv(rows, block_rows)
    num_partials = 2 if n_blocks >= 2 else 1      # lets v7x use both TensorCores
    bpp = pl.cdiv(n_blocks, num_partials)         # blocks per partial
    mask_needed = (num_partials * bpp * block_rows) != rows

    def in_index(p_idx, j_idx):
        # Clamp so duplicate / boundary grid points never index past the last
        # real block; their contribution is zeroed by the in-kernel row mask.
        return (jnp.minimum(p_idx * bpp + j_idx, n_blocks - 1), 0)

    tile_spec = pl.BlockSpec((block_rows, _LANE), in_index)
    out_spec = pl.BlockSpec((1, _SUBLANE, _LANE), lambda p_idx, j_idx: (p_idx, 0, 0))

    operands = [_flat(x), _flat(t)]
    in_specs = [tile_spec, tile_spec]
    if has_weight_stream:
        operands.append(_flat(weight))
        in_specs.append(tile_spec)

    bytes_accessed = sum(int(o.size) * o.dtype.itemsize for o in operands) \
        + num_partials * _SUBLANE * _LANE * 4
    cost = pl.CostEstimate(flops=8 * n, transcendentals=n,
                           bytes_accessed=int(bytes_accessed))

    kernel = _make_wing_kernel(w, e, c, rows, block_rows, bpp, n_blocks,
                               mask_needed, has_weight_stream,
                               1.0 if wscale is None else wscale)

    partials = pl.pallas_call(
        kernel,
        out_shape=jax.ShapeDtypeStruct((num_partials, _SUBLANE, _LANE), jnp.float32),
        grid=(num_partials, bpp),
        in_specs=in_specs,
        out_specs=out_spec,
        compiler_params=pltpu.CompilerParams(
            dimension_semantics=("parallel", "arbitrary"),
        ),
        cost_estimate=cost,
    )(*operands)

    # Final cross-lane reduce over (num_partials * 8 * 128) partial sums.
    return jnp.sum(partials)


def _wing_loss_ref(x, t, weight, w=10.0, e=2.0):
    c = w - w * math.log(1.0 + w / e)
    diff = weight * (x - t)
    abs_diff = jnp.abs(diff)
    flag = (abs_diff < w).astype(jnp.float32)
    y = flag * w * jnp.log(1.0 + abs_diff / e) + (1.0 - flag) * (abs_diff - c)
    return jnp.sum(y)


if __name__ == "__main__":
    key = jax.random.PRNGKey(0)
    k1, k2, k3, k4, k5, k6 = jax.random.split(key, 6)

    # (1) dense per-element weight at the module's small example shape.
    shape = (2, 4, 16, 16)
    x = jax.random.uniform(k1, shape, jnp.float32, -20.0, 20.0)
    t = jax.random.uniform(k2, shape, jnp.float32, -20.0, 20.0)
    wt = jax.random.uniform(k3, shape, jnp.float32, 0.0, 2.0)
    out1 = wing_loss(x, t, wt)
    jax.block_until_ready(out1)
    np.testing.assert_allclose(np.asarray(out1), np.asarray(_wing_loss_ref(x, t, wt)),
                               rtol=2e-3, atol=1e-2)

    # (2) scalar loss weight: folded into kernel constants (only 2 HBM streams).
    out2 = wing_loss(x, t, 0.7)
    jax.block_until_ready(out2)
    np.testing.assert_allclose(np.asarray(out2), np.asarray(_wing_loss_ref(x, t, 0.7)),
                               rtol=2e-3, atol=1e-2)

    # (3) multi-block streaming path: ragged last block, 2-way partials, clamped
    #     duplicate grid point, zero-copy (n is a multiple of 128, no pad).
    n3 = 4100 * 128
    x3 = jax.random.normal(k4, (n3,), jnp.float32) * 8.0
    t3 = jax.random.normal(k5, (n3,), jnp.float32) * 8.0
    w3 = jax.random.uniform(k6, (n3,), jnp.float32, 0.0, 2.0)
    out3 = wing_loss(x3, t3, w3)
    jax.block_until_ready(out3)
    np.testing.assert_allclose(np.asarray(out3), np.asarray(_wing_loss_ref(x3, t3, w3)),
                               rtol=2e-3, atol=5e-1)

    print("KERNEL_OK")
</pallas_src>

<mosaic_0001>
module attributes {stable_mosaic.version = 11 : i64} {
  func.func @kernel(%arg0: i32, %arg1: i32, %arg2: memref<16x128xf32, #tpu.memory_space<vmem>>, %arg3: memref<16x128xf32, #tpu.memory_space<vmem>>, %arg4: memref<16x128xf32, #tpu.memory_space<vmem>>, %arg5: memref<1x8x128xf32, #tpu.memory_space<vmem>>) attributes {dimension_semantics = [#tpu.dimension_semantics<parallel>, #tpu.dimension_semantics<arbitrary>], iteration_bounds = array<i64: 1, 1>, scalar_prefetch = 0 : i64, scratch_operands = 0 : i64, tpu.core_type = #tpu.core_type<tc>, window_params = [{transform_indices = @transform_0, window_bounds = array<i64: 16, 128>}, {transform_indices = @transform_1, window_bounds = array<i64: 16, 128>}, {transform_indices = @transform_2, window_bounds = array<i64: 16, 128>}, {transform_indices = @transform_3, window_bounds = array<i64: 1, 8, 128>}]} {
    %c0_i32 = arith.constant 0 : i32
    %0 = arith.cmpi eq, %arg1, %c0_i32 : i32
    %1 = arith.extui %0 : i1 to i32
    %c0_i32_0 = arith.constant 0 : i32
    %2 = arith.cmpi ne, %1, %c0_i32_0 : i32
    scf.if %2 {
      %cst_17 = arith.constant 0.000000e+00 : f32
      %29 = vector.broadcast %cst_17 : f32 to vector<1x8x128xf32>
      %c0_18 = arith.constant 0 : index
      %c0_19 = arith.constant 0 : index
      %c0_20 = arith.constant 0 : index
      %30 = vector.load %arg5[%c0_18, %c0_19, %c0_20] : memref<1x8x128xf32, #tpu.memory_space<vmem>>, vector<1x8x128xf32>
      tpu.vector_store %arg5[%c0_18, %c0_19, %c0_20], %29 {strides = array<i32>} : memref<1x8x128xf32, #tpu.memory_space<vmem>>, vector<1x8x128xf32>,
    } else {
    }
    %c0 = arith.constant 0 : index
    %c0_1 = arith.constant 0 : index
    %3 = vector.load %arg2[%c0, %c0_1] : memref<16x128xf32, #tpu.memory_space<vmem>>, vector<16x128xf32>
    %c0_2 = arith.constant 0 : index
    %c0_3 = arith.constant 0 : index
    %4 = vector.load %arg3[%c0_2, %c0_3] : memref<16x128xf32, #tpu.memory_space<vmem>>, vector<16x128xf32>
    %5 = arith.subf %3, %4 : vector<16x128xf32>
    %c0_4 = arith.constant 0 : index
    %c0_5 = arith.constant 0 : index
    %6 = vector.load %arg4[%c0_4, %c0_5] : memref<16x128xf32, #tpu.memory_space<vmem>>, vector<16x128xf32>
    %7 = arith.mulf %6, %5 : vector<16x128xf32>
    %8 = math.absf %7 : vector<16x128xf32>
    %cst = arith.constant 5.000000e-01 : f32
    %9 = vector.broadcast %cst : f32 to vector<16x128xf32>
    %10 = arith.mulf %8, %9 : vector<16x128xf32>
    %cst_6 = arith.constant 1.000000e+00 : f32
    %11 = vector.broadcast %cst_6 : f32 to vector<16x128xf32>
    %12 = arith.addf %11, %10 : vector<16x128xf32>
    %13 = math.log %12 : vector<16x128xf32>
    %cst_7 = arith.constant 1.000000e+01 : f32
    %14 = vector.broadcast %cst_7 : f32 to vector<16x128xf32>
    %15 = arith.mulf %14, %13 : vector<16x128xf32>
    %cst_8 = arith.constant -7.9175949 : f32
    %16 = vector.broadcast %cst_8 : f32 to vector<16x128xf32>
    %17 = arith.subf %8, %16 : vector<16x128xf32>
    %cst_9 = arith.constant 1.000000e+01 : f32
    %18 = vector.broadcast %cst_9 : f32 to vector<16x128xf32>
    %19 = arith.cmpf olt, %8, %18 : vector<16x128xf32>
    %20 = arith.select %19, %15, %17 : vector<16x128xi1>, vector<16x128xf32>
    %c0_10 = arith.constant 0 : index
    %c0_11 = arith.constant 0 : index
    %c0_12 = arith.constant 0 : index
    %21 = vector.load %arg5[%c0_10, %c0_11, %c0_12] : memref<1x8x128xf32, #tpu.memory_space<vmem>>, vector<1x8x128xf32>
    %22 = vector.shape_cast %21 : vector<1x8x128xf32> to vector<8x128xf32>
    %23 = vector.shape_cast %20 : vector<16x128xf32> to vector<2x8x128xf32>
    %cst_13 = arith.constant dense<0.000000e+00> : vector<8x128xf32>
    %24 = vector.multi_reduction <add>, %23, %cst_13 [0] : vector<2x8x128xf32> to vector<8x128xf32>
    %25 = arith.addf %22, %24 : vector<8x128xf32>
    %c0_14 = arith.constant 0 : index
    %c0_15 = arith.constant 0 : index
    %c0_16 = arith.constant 0 : index
    %26 = vector.load %arg5[%c0_14, %c0_15, %c0_16] : memref<1x8x128xf32, #tpu.memory_space<vmem>>, vector<1x8x128xf32>
    %27 = vector.shape_cast %26 : vector<1x8x128xf32> to vector<8x128xf32>
    %28 = vector.shape_cast %25 : vector<8x128xf32> to vector<1x8x128xf32>
    tpu.vector_store %arg5[%c0_14, %c0_15, %c0_16], %28 {strides = array<i32>} : memref<1x8x128xf32, #tpu.memory_space<vmem>>, vector<1x8x128xf32>,
    return
  }
  func.func @transform_0(%arg0: i32, %arg1: i32) -> (i32, i32) {
    %c1_i32 = arith.constant 1 : i32
    %0 = arith.muli %arg0, %c1_i32 : i32
    %1 = arith.addi %0, %arg1 : i32
    %c0_i32 = arith.constant 0 : i32
    %2 = arith.minsi %1, %c0_i32 : i32
    %c0_i32_0 = arith.constant 0 : i32
    %c0_i32_1 = arith.constant 0 : i32
    return %2, %c0_i32_0 : i32, i32
  }
  func.func @transform_1(%arg0: i32, %arg1: i32) -> (i32, i32) {
    %c1_i32 = arith.constant 1 : i32
    %0 = arith.muli %arg0, %c1_i32 : i32
    %1 = arith.addi %0, %arg1 : i32
    %c0_i32 = arith.constant 0 : i32
    %2 = arith.minsi %1, %c0_i32 : i32
    %c0_i32_0 = arith.constant 0 : i32
    %c0_i32_1 = arith.constant 0 : i32
    return %2, %c0_i32_0 : i32, i32
  }
  func.func @transform_2(%arg0: i32, %arg1: i32) -> (i32, i32) {
    %c1_i32 = arith.constant 1 : i32
    %0 = arith.muli %arg0, %c1_i32 : i32
    %1 = arith.addi %0, %arg1 : i32
    %c0_i32 = arith.constant 0 : i32
    %2 = arith.minsi %1, %c0_i32 : i32
    %c0_i32_0 = arith.constant 0 : i32
    %c0_i32_1 = arith.constant 0 : i32
    return %2, %c0_i32_0 : i32, i32
  }
  func.func @transform_3(%arg0: i32, %arg1: i32) -> (i32, i32, i32) {
    %c0_i32 = arith.constant 0 : i32
    %c0_i32_0 = arith.constant 0 : i32
    %c0_i32_1 = arith.constant 0 : i32
    return %arg0, %c0_i32, %c0_i32_0 : i32, i32, i32
  }
}

</mosaic_0001>

<llo_original>
// kernel: tpu_custom_call.1
$region0: #{tpu_custom_call.1}
  #allocation0 [shape = 'u32[]', space=smem, size = 0x4, offset = 0x4, fixed_abs, tag = 'smem constant byte address 0x4 - core index']
  #allocation1 [shape = 'u32[144,128]{1,0:T(1,128)}', space=vmem, size = 0x12000, scoped, tag = 'internal scratch']
  %s0 = inlined_call_operand.hbm [shape: f32[16,128], index: 0, kind: input, shape index: {}]
  %s1 = inlined_call_operand.hbm [shape: f32[16,128], index: 1, kind: input, shape index: {}]
  %s2 = inlined_call_operand.hbm [shape: f32[16,128], index: 2, kind: input, shape index: {}]
  %s3 = inlined_call_operand.hbm [shape: f32[1,8,128], index: 3, kind: output, shape index: {}]
  %s4 = sld [smem:[#allocation0]]
  $region38: #{tpu_custom_call.1} parent=0
    _
  %s6 = ssub.s32 1, %s4
  %s7 = scalar_select 0, %s6, %s4
  $region1: #{tpu_custom_call.1} parent=0
    #allocation2 [shape = 'u8[8192]{0}', space=vmem, size = 0x2000, scoped, tag = 'input window, operand 0, single buffered']
    #allocation3 [shape = 's32[1]{0}', space=sflag, size = 0x4, scoped, tag = 'scoped memory for tpu_custom_call.1']
    #allocation4 [shape = 's32[1]{0}', space=sflag, size = 0x4, scoped, tag = 'scoped memory for tpu_custom_call.1']
    #allocation5 [shape = 'u8[8192]{0}', space=vmem, size = 0x2000, scoped, tag = 'input window, operand 1, single buffered']
    #allocation6 [shape = 's32[1]{0}', space=sflag, size = 0x4, scoped, tag = 'scoped memory for tpu_custom_call.1']
    #allocation7 [shape = 'u8[8192]{0}', space=vmem, size = 0x2000, scoped, tag = 'input window, operand 2, single buffered']
    #allocation8 [shape = 'u8[4096]{0}', space=vmem, size = 0x1000, scoped, tag = 'output window, operand 0, single buffered']
    %8 = vsyncpa [#allocation3], 0
    %9 = vsyncpa [#allocation6], 0
    %10 = vsyncpa [#allocation4], 0
    // Predicated region
    $region2: #{tpu_custom_call.1} parent=1 // pred_check
      _
    $region3: #{tpu_custom_call.1} parent=1 // pred_check_branch
      %12 = sbr.rel (0) target = $region5
    $region4: #{tpu_custom_call.1} parent=1 // pred_region
      %s13 = sadd.s32 0, 0
      %p14 = scmp.lt.s32.totalorder %s13, 0
      %s15 = scalar_select %p14, %s13, 0
      %s16 = smul.u32 2, %s15
      %s18 = ssub.s32 256, 256
      %19 = vsyncadd [#allocation3], %s18
      %s20 = smul.addr %s16, 128
      %s21 = scalar_lea.hbm %s0, %s20
      %s22 = sshll.u32 [#allocation2], 4
      %s23 = int_to_ptr.vmem [resolvable:$true] %s22
      %28 = dma.hbm_to_vmem [thread:$0]  %s21, 256, %s23, [#allocation3], 128, 128, 8
    $region5: #{tpu_custom_call.1} parent=1 // pred_fallthru
      _
    // Predicated region
    $region6: #{tpu_custom_call.1} parent=1 // pred_check
      _
    $region7: #{tpu_custom_call.1} parent=1 // pred_check_branch
      %30 = sbr.rel (0) target = $region9
    $region8: #{tpu_custom_call.1} parent=1 // pred_region
      %s31 = sadd.s32 0, 0
      %p32 = scmp.lt.s32.totalorder %s31, 0
      %s33 = scalar_select %p32, %s31, 0
      %s34 = smul.u32 2, %s33
      %s36 = ssub.s32 256, 256
      %37 = vsyncadd [#allocation6], %s36
      %s38 = smul.addr %s34, 128
      %s39 = scalar_lea.hbm %s1, %s38
      %s40 = sshll.u32 [#allocation5], 4
      %s41 = int_to_ptr.vmem [resolvable:$true] %s40
      %46 = dma.hbm_to_vmem [thread:$0]  %s39, 256, %s41, [#allocation6], 128, 128, 8
    $region9: #{tpu_custom_call.1} parent=1 // pred_fallthru
      _
    // Predicated region
    $region10: #{tpu_custom_call.1} parent=1 // pred_check
      _
    $region11: #{tpu_custom_call.1} parent=1 // pred_check_branch
      %48 = sbr.rel (0) target = $region13
    $region12: #{tpu_custom_call.1} parent=1 // pred_region
      %s49 = sadd.s32 0, 0
      %p50 = scmp.lt.s32.totalorder %s49, 0
      %s51 = scalar_select %p50, %s49, 0
      %s52 = smul.u32 2, %s51
      %s54 = ssub.s32 256, 256
      %55 = vsyncadd [#allocation6], %s54
      %s56 = smul.addr %s52, 128
      %s57 = scalar_lea.hbm %s2, %s56
      %s58 = sshll.u32 [#allocation7], 4
      %s59 = int_to_ptr.vmem [resolvable:$true] %s58
      %64 = dma.hbm_to_vmem [thread:$0]  %s57, 256, %s59, [#allocation6], 128, 128, 8
    $region13: #{tpu_custom_call.1} parent=1 // pred_fallthru
      _
    // Predicated region
    $region14: #{tpu_custom_call.1} parent=1 // pred_check
      _
    $region15: #{tpu_custom_call.1} parent=1 // pred_check_branch
      %66 = sbr.rel (0) target = $region17
    $region16: #{tpu_custom_call.1} parent=1 // pred_region
      %67 = dma.done [#allocation3], 256
    $region17: #{tpu_custom_call.1} parent=1 // pred_fallthru
      _
    // Predicated region
    $region18: #{tpu_custom_call.1} parent=1 // pred_check
      _
    $region19: #{tpu_custom_call.1} parent=1 // pred_check_branch
      %69 = sbr.rel (0) target = $region21
    $region20: #{tpu_custom_call.1} parent=1 // pred_region
      %70 = dma.done [#allocation6], 256
    $region21: #{tpu_custom_call.1} parent=1 // pred_fallthru
      _
    // Predicated region
    $region22: #{tpu_custom_call.1} parent=1 // pred_check
      _
    $region23: #{tpu_custom_call.1} parent=1 // pred_check_branch
      %72 = sbr.rel (0) target = $region25
    $region24: #{tpu_custom_call.1} parent=1 // pred_region
      %73 = dma.done [#allocation6], 256
    $region25: #{tpu_custom_call.1} parent=1 // pred_fallthru
      _
    %s74 = sadd.s32 0, 0
    %p75 = scmp.lt.s32.totalorder %s74, 0
    %s76 = scalar_select %p75, %s74, 0
    %s77 = smul.u32 2, %s76
    %s78 = sadd.s32 0, 0
    %p79 = scmp.lt.s32.totalorder %s78, 0
    %s80 = scalar_select %p79, %s78, 0
    %s81 = smul.u32 2, %s80
    %s82 = sadd.s32 0, 0
    %p83 = scmp.lt.s32.totalorder %s82, 0
    %s84 = scalar_select %p83, %s82, 0
    %s85 = smul.u32 2, %s84
    %p86 = scmp.eq.s32.totalorder 0, 0
    // Predicated region
    $region26: #{tpu_custom_call.1} parent=1 // pred_check
      %p87 = pneg %p86
    $region27: #{tpu_custom_call.1} parent=1 // pred_check_branch
      %89 = sbr.rel (%p87) target = $region29
    $region28: #{tpu_custom_call.1} parent=1 // pred_region
      %90 = vst [vmem:[#allocation8] sm:$0xff] 0.0
    $region29: #{tpu_custom_call.1} parent=1 // pred_fallthru
      _
    %v91 = vld [vmem:[#allocation2] sm:$0xff]
    %v92 = vld [vmem:[#allocation2 + $0x8] sm:$0xff]
    %v93 = vld [vmem:[#allocation5] sm:$0xff]
    %v94 = vld [vmem:[#allocation5 + $0x8] sm:$0xff]
    %v95 = vsub.f32 %v91, %v93
    %v96 = vsub.f32 %v92, %v94
    %v97 = vld [vmem:[#allocation7] sm:$0xff]
    %v98 = vld [vmem:[#allocation7 + $0x8] sm:$0xff]
    %v99 = vmul.f32 %v97, %v95
    %v100 = vmul.f32 %v98, %v96
    %v101 = vand.u32 2147483647, %v99
    %v102 = vand.u32 2147483647, %v100
    %v103 = vmul.f32 %v101, 0.5
    %v104 = vmul.f32 %v102, 0.5
    %v105 = vadd.f32 %v103, 1.0
    %v106 = vadd.f32 %v104, 1.0
    %v107 = vlog2.pop %v105
    %v108 = vmul.f32 %v107, 0.6931472
    %v109 = vlog2.pop %v106
    %v110 = vmul.f32 %v109, 0.6931472
    %v111 = vmul.f32 %v108, 10.0
    %v112 = vmul.f32 %v110, 10.0
    %v113 = vsub.f32 %v101, -7.917595
    %v114 = vsub.f32 %v102, -7.917595
    %vm115 = vcmp.lt.f32.partialorder %v101, 10.0
    %vm116 = vcmp.lt.f32.partialorder %v102, 10.0
    %v117 = vsel %vm115, %v111, %v113
    %v118 = vsel %vm116, %v112, %v114
    %v119 = vld [vmem:[#allocation8] sm:$0xff]
    %v120 = vadd.f32 %v117, %v118
    %v121 = vadd.f32 %v119, %v120
    %122 = vst [vmem:[#allocation8] sm:$0xff] %v121
    // Predicated region
    $region30: #{tpu_custom_call.1} parent=1 // pred_check
      _
    $region31: #{tpu_custom_call.1} parent=1 // pred_check_branch
      %124 = sbr.rel (0) target = $region33
    $region32: #{tpu_custom_call.1} parent=1 // pred_region
      %s126 = ssub.s32 128, 128
      %127 = vsyncadd [#allocation4], %s126
      %s129 = sshll.u32 [#allocation8], 4
      %s130 = int_to_ptr.vmem [resolvable:$true] %s129
      %132 = dma.vmem_to_hbm [thread:$0]  %s130, 128, %s3, [#allocation4]
    $region33: #{tpu_custom_call.1} parent=1 // pred_fallthru
      _
    // Predicated region
    $region34: #{tpu_custom_call.1} parent=1 // pred_check
      _
    $region35: #{tpu_custom_call.1} parent=1 // pred_check_branch
      %134 = sbr.rel (0) target = $region37
    $region36: #{tpu_custom_call.1} parent=1 // pred_region
      %135 = dma.done [#allocation4], 128
    $region37: #{tpu_custom_call.1} parent=1 // pred_fallthru
      _
    %136 = vsyncpa [#allocation3], 1
    %137 = vsyncpa [#allocation6], 1
    %138 = vsyncpa [#allocation4], 1

</llo_original>
